<compile_context>
chip_gen: v7x
topology: tpu7x:2x2x1
jax: 0.10.0
libtpu: 0.0.40
codegen_flags: <defaults>
</compile_context>

<pallas_src>
import functools

import jax
import jax.numpy as jnp
from jax.experimental import pallas as pl
from jax.experimental.pallas import tpu as pltpu


# ---------------------------------------------------------------------------
# One-time, per-backend probes (tiny pallas_calls).
# ---------------------------------------------------------------------------
@functools.lru_cache(maxsize=None)
def _roll_sign(backend):
    """+1 if pltpu.roll follows jnp.roll semantics (out[i] = in[i - shift])."""
    del backend

    def probe(x_ref, o_ref):
        o_ref[...] = pltpu.roll(x_ref[...], shift=1, axis=1)

    xp = jnp.tile(jnp.arange(128, dtype=jnp.float32)[None, :], (8, 1))
    yp = pl.pallas_call(
        probe, out_shape=jax.ShapeDtypeStruct((8, 128), jnp.float32))(xp)
    return 1 if float(yp[0, 0]) == 127.0 else -1


@functools.lru_cache(maxsize=None)
def _strided_store_ok(backend):
    """True iff sublane-strided ref stores compile and produce correct values."""
    del backend
    try:
        def probe(x_ref, o_ref):
            o_ref[pl.ds(0, 8, stride=2), :] = x_ref[...]
            o_ref[pl.ds(1, 8, stride=2), :] = x_ref[...] + 1000.0

        x = jnp.arange(8 * 128, dtype=jnp.float32).reshape(8, 128)
        y = pl.pallas_call(
            probe, out_shape=jax.ShapeDtypeStruct((16, 128), jnp.float32))(x)
        y = jax.block_until_ready(y)
        return (bool(jnp.array_equal(y[0::2], x))
                and bool(jnp.array_equal(y[1::2], x + 1000.0)))
    except Exception:
        return False


# ---------------------------------------------------------------------------
# Kernel
# ---------------------------------------------------------------------------
def _unitb_kernel(roll_sign, store_mode, x1_ref, x2_ref, halo_ref, w1_ref,
                  b1_ref, wd_ref, s2_ref, w3_ref, b3_ref, out_ref):
    """One (batch, L-tile) step of the fused UnitB branch + shuffle write.

    x1_ref  : (Cb, tL)  f32        pass-through half of x
    x2_ref  : (Cb, tL)  f32/bf16   branch-input half of x
    halo_ref: (C, K-1)  f32        y1 = relu(W1 x2 + b1) at the K-1 boundary
                                   columns [left pad_l | right pad_r], already
                                   zeroed outside the sequence (wrapper-made)
    w1_ref  : (C, Cb)   mxu dtype  1x1 conv weight, BN1-folded
    b1_ref  : (C, 1)    f32        1x1 conv bias,   BN1-folded
    wd_ref  : (C, K)    f32        depthwise weight, BN2-folded
    s2_ref  : (C, 1)    f32        BN2 shift (depthwise conv has no bias)
    w3_ref  : (Cb, C)   mxu dtype  1x1 conv weight, BN3-folded
    b3_ref  : (Cb, 1)   f32        1x1 conv bias,   BN3-folded
    out_ref : (C, tL)   f32        dense shuffled output: row 2c <- x1[c],
                                   row 2c+1 <- branch[c]
    """
    Cb, tL = x2_ref.shape
    C = w1_ref.shape[0]
    K = wd_ref.shape[1]
    pad_l = (K - 1) // 2
    pad_r = (K - 1) - pad_l
    mxu_dt = w1_ref.dtype

    # --- 1x1 conv (Cb -> C) + folded BN1 + ReLU  (MXU) ----------------------
    y1 = jnp.dot(w1_ref[...], x2_ref[...].astype(mxu_dt),
                 preferred_element_type=jnp.float32)
    y1 = jnp.maximum(y1 + b1_ref[...], 0.0)                     # (C, tL) f32

    # --- depthwise conv (K taps, 'same') + folded BN2 -----------------------
    # Taps via circular XLU rolls, then K-1 narrow boundary-lane corrections.
    wd = wd_ref[...]                                            # (C, K)
    acc = wd[:, pad_l:pad_l + 1] * y1                           # center tap
    for d in range(-pad_l, pad_r + 1):                          # K static taps
        if d == 0:
            continue
        rolled = pltpu.roll(y1, shift=(-roll_sign * d) % tL, axis=1)
        acc = acc + wd[:, d + pad_l:d + pad_l + 1] * rolled

    if K > 1:
        halo = halo_ref[...]                                    # (C, K-1)
        lane = jax.lax.broadcasted_iota(jnp.int32, (C, tL), 1)  # hoisted
        # left edge lanes j in [0, pad_l): replace wrapped columns by halo.
        for j in range(pad_l):
            delta = jnp.zeros((C, 1), jnp.float32)
            for d in range(-pad_l, -j):
                wcol = wd[:, d + pad_l:d + pad_l + 1]
                h = halo[:, pad_l + j + d:pad_l + j + d + 1]
                wrapped = y1[:, tL + j + d:tL + j + d + 1]
                delta = delta + wcol * (h - wrapped)
            acc = jnp.where(lane == j, acc + delta, acc)
        # right edge lanes j = tL - s, s in [1, pad_r].
        for s in range(1, pad_r + 1):
            j = tL - s
            delta = jnp.zeros((C, 1), jnp.float32)
            for d in range(s, pad_r + 1):
                wcol = wd[:, d + pad_l:d + pad_l + 1]
                h = halo[:, pad_l + d - s:pad_l + d - s + 1]
                wrapped = y1[:, d - s:d - s + 1]
                delta = delta + wcol * (h - wrapped)
            acc = jnp.where(lane == j, acc + delta, acc)

    y2 = acc + s2_ref[...]                                      # (C, tL) f32

    # --- 1x1 conv (C -> Cb) + folded BN3 + ReLU  (MXU) ----------------------
    y3 = jnp.dot(w3_ref[...], y2.astype(mxu_dt),
                 preferred_element_type=jnp.float32)
    branch = jnp.maximum(y3 + b3_ref[...], 0.0).astype(out_ref.dtype)

    # --- fused concat + channel_shuffle(groups=2) into the dense output -----
    x1 = x1_ref[...].astype(out_ref.dtype)
    if store_mode == "strided":
        out_ref[pl.ds(0, Cb, stride=2), :] = x1                 # rows 0,2,4,...
        out_ref[pl.ds(1, Cb, stride=2), :] = branch             # rows 1,3,5,...
    else:  # per-row fallback (always lowers)
        for c in range(Cb):
            out_ref[2 * c:2 * c + 1, :] = x1[c:c + 1, :]
            out_ref[2 * c + 1:2 * c + 2, :] = branch[c:c + 1, :]


# ---------------------------------------------------------------------------
# Wrapper
# ---------------------------------------------------------------------------
def _pick_tile_l(L, C):
    cands = [t for t in (1024, 512, 384, 256, 128) if L % t == 0]
    if not cands:
        return L                       # ragged L: single tile (correct path)
    budget = 4 << 20                   # keep ~6 f32 (C, tile_l) temporaries small
    for t in cands:
        if 6 * C * t * 4 <= budget:
            return t
    return cands[-1]


def unitb_forward(x, fused_params, *, tile_l=None, mxu_dtype=jnp.bfloat16):
    """x: (B, C, L) float32.  Returns (B, C, L) float32 (UnitB forward)."""
    B, C, L = x.shape
    Cb = C // 2
    if C != 2 * Cb:
        raise ValueError("num_channels must be even")
    w1f, b1f, wdf, sh2, w3f, b3f = fused_params
    K = wdf.shape[1]
    pad_l = (K - 1) // 2
    pad_r = (K - 1) - pad_l

    if tile_l is None:
        tile_l = _pick_tile_l(L, C)
    if tile_l != L and (L % tile_l != 0 or tile_l % 128 != 0):
        raise ValueError("tile_l must equal L or be a multiple of 128 dividing L")
    if K > 1 and K - 1 >= tile_l:
        raise ValueError("kernel_size - 1 must be smaller than tile_l")
    n_l = L // tile_l
    H = max(K - 1, 1)

    mxu_dtype = jnp.dtype(mxu_dtype)
    same_dtype = (mxu_dtype == x.dtype)
    split_ok = (Cb % 8 == 0)           # half-channel blocks stay 8-aligned

    x1_arr, x1_blk = (x, 0) if split_ok else (x[:, :Cb, :], 0)
    if same_dtype and split_ok:
        x2_arr, x2_blk = x, 1          # second channel-half of the same array
    else:
        x2_arr, x2_blk = x[:, Cb:, :].astype(mxu_dtype), 0   # pre-cast branch input

    # --- wrapper-side halo: y1 = relu(W1 x2 + b1) on the K-1 boundary columns
    # of every L-tile, masked to zero outside the sequence.  O(B*n_l*C*K). ----
    if K > 1:
        x2t = x[:, Cb:, :].reshape(B, Cb, n_l, tile_l)
        parts = []
        if pad_l > 0:   # left halo of tile l = last pad_l columns of tile l-1
            tails = x2t[:, :, :, tile_l - pad_l:]
            parts.append(
                jnp.pad(tails, ((0, 0), (0, 0), (1, 0), (0, 0)))[:, :, :n_l, :])
        if pad_r > 0:   # right halo of tile l = first pad_r columns of tile l+1
            heads = x2t[:, :, :, :pad_r]
            parts.append(
                jnp.pad(heads, ((0, 0), (0, 0), (0, 1), (0, 0)))[:, :, 1:, :])
        x2_halo = jnp.concatenate(parts, axis=3)                 # (B,Cb,n_l,K-1)
        y1_halo = jnp.einsum('oc,bcnh->bonh', w1f, x2_halo)
        y1_halo = jnp.maximum(y1_halo + b1f.reshape(1, C, 1, 1), 0.0)
        mask = jnp.ones((n_l, K - 1), jnp.float32)               # zero-pad edges
        if pad_l > 0:
            mask = mask.at[0, :pad_l].set(0.0)
        if pad_r > 0:
            mask = mask.at[n_l - 1, pad_l:].set(0.0)
        y1_halo = y1_halo * mask[None, None, :, :]
        halo = y1_halo.transpose(0, 2, 1, 3).reshape(B * n_l, C, K - 1)
    else:
        halo = jnp.zeros((B * n_l, C, 1), jnp.float32)

    # MXU weights in the requested (narrow) dtype; elementwise params stay f32.
    w1m = w1f.astype(mxu_dtype)
    w3m = w3f.astype(mxu_dtype)

    flops = B * L * (4 * C * Cb + 2 * K * C)
    bytes_accessed = int(
        B * Cb * L * x.dtype.itemsize
        + B * Cb * L * x2_arr.dtype.itemsize
        + halo.size * halo.dtype.itemsize
        + B * C * L * 4
        + sum(int(a.size) * a.dtype.itemsize
              for a in (w1m, b1f, wdf, sh2, w3m, b3f)))

    roll_sign = _roll_sign(jax.default_backend())

    def build(store_mode):
        kernel = functools.partial(_unitb_kernel, roll_sign, store_mode)
        return pl.pallas_call(
            kernel,
            out_shape=jax.ShapeDtypeStruct((B, C, L), jnp.float32),
            grid_spec=pltpu.PrefetchScalarGridSpec(
                num_scalar_prefetch=0,
                grid=(B, n_l),
                in_specs=[
                    pl.BlockSpec((None, Cb, tile_l),
                                 lambda b, l: (b, x1_blk, l)),        # x1 half
                    pl.BlockSpec((None, Cb, tile_l),
                                 lambda b, l: (b, x2_blk, l)),        # x2 half
                    pl.BlockSpec((None, C, H),
                                 lambda b, l: (b * n_l + l, 0, 0)),   # y1 halo
                    pl.BlockSpec((C, Cb), lambda b, l: (0, 0)),       # w1
                    pl.BlockSpec((C, 1), lambda b, l: (0, 0)),        # b1
                    pl.BlockSpec((C, K), lambda b, l: (0, 0)),        # wd
                    pl.BlockSpec((C, 1), lambda b, l: (0, 0)),        # s2
                    pl.BlockSpec((Cb, C), lambda b, l: (0, 0)),       # w3
                    pl.BlockSpec((Cb, 1), lambda b, l: (0, 0)),       # b3
                ],
                out_specs=pl.BlockSpec((None, C, tile_l),
                                       lambda b, l: (b, 0, l)),
            ),
            compiler_params=pltpu.CompilerParams(
                dimension_semantics=("parallel", "parallel")),
            cost_estimate=pl.CostEstimate(
                flops=flops, transcendentals=0,
                bytes_accessed=bytes_accessed),
        )(x1_arr, x2_arr, halo, w1m, b1f, wdf, sh2, w3m, b3f)

    if _strided_store_ok(jax.default_backend()):
        try:
            return build("strided")
        except Exception:
            pass
    return build("rows")


# ---------------------------------------------------------------------------
# Deterministic parameter construction + BN folding (plain-JAX glue)
# ---------------------------------------------------------------------------
def make_bn(n, salt):
    gamma = 1.0 + 0.05 * jnp.arange(n, dtype=jnp.float32)
    beta = 0.05 * jnp.arange(n, dtype=jnp.float32) - 0.1 * salt
    mean = 0.02 * jnp.arange(n, dtype=jnp.float32) + 0.01 * salt
    var = 1.0 + 0.03 * jnp.arange(n, dtype=jnp.float32)
    return gamma, beta, mean, var


def init_raw_params(key, C, K):
    Cb = C // 2
    ks = jax.random.split(key, 5)
    w1 = 0.2 * jax.random.normal(ks[0], (C, Cb), jnp.float32)   # Conv1d(Cb->C,1).weight[:,:,0]
    b1 = 0.1 * jax.random.normal(ks[1], (C,), jnp.float32)
    wd = 0.2 * jax.random.normal(ks[2], (C, K), jnp.float32)    # depthwise weight[:,0,:]
    w3 = 0.2 * jax.random.normal(ks[3], (Cb, C), jnp.float32)   # Conv1d(C->Cb,1).weight[:,:,0]
    b3 = 0.1 * jax.random.normal(ks[4], (Cb,), jnp.float32)
    return (w1, b1, wd, w3, b3, make_bn(C, 1), make_bn(C, 2), make_bn(Cb, 3))


def fold_bn(raw, eps=1e-5):
    w1, b1, wd, w3, b3, bn1, bn2, bn3 = raw
    g1, be1, m1, v1 = bn1
    g2, be2, m2, v2 = bn2
    g3, be3, m3, v3 = bn3
    s1 = g1 / jnp.sqrt(v1 + eps)
    s2 = g2 / jnp.sqrt(v2 + eps)
    s3 = g3 / jnp.sqrt(v3 + eps)
    w1f = w1 * s1[:, None]
    b1f = ((b1 - m1) * s1 + be1)[:, None]
    wdf = wd * s2[:, None]
    sh2 = (be2 - m2 * s2)[:, None]
    w3f = w3 * s3[:, None]
    b3f = ((b3 - m3) * s3 + be3)[:, None]
    return (w1f, b1f, wdf, sh2, w3f, b3f)


# ---------------------------------------------------------------------------
# Pure-JAX reference (mirrors the PyTorch eval-mode forward, unfused)
# ---------------------------------------------------------------------------
def ref_forward(x, raw, eps=1e-5):
    w1, b1, wd, w3, b3, bn1, bn2, bn3 = raw
    B, C, L = x.shape
    Cb = C // 2
    K = wd.shape[1]

    def bn_apply(y, bn):
        g, be, m, v = bn
        return (y - m[None, :, None]) / jnp.sqrt(v[None, :, None] + eps) \
            * g[None, :, None] + be[None, :, None]

    x1, x2 = x[:, :Cb, :], x[:, Cb:, :]
    y = jnp.einsum('oc,bcl->bol', w1, x2) + b1[None, :, None]
    y = jnp.maximum(bn_apply(y, bn1), 0.0)
    left = (K - 1) // 2
    right = (K - 1) - left
    yp = jnp.pad(y, ((0, 0), (0, 0), (left, right)))
    y2 = sum(yp[:, :, k:k + L] * wd[None, :, k:k + 1] for k in range(K))
    y2 = bn_apply(y2, bn2)
    y3 = jnp.einsum('oc,bcl->bol', w3, y2) + b3[None, :, None]
    y3 = jnp.maximum(bn_apply(y3, bn3), 0.0)
    out = jnp.concatenate([x1, y3], axis=1)
    out = out.reshape(B, 2, C // 2, L).transpose(0, 2, 1, 3).reshape(B, C, L)
    return out


if __name__ == "__main__":
    B, C, L, K = 2, 16, 256, 3   # batch, num_channels, seq length, kernel_size

    key = jax.random.PRNGKey(0)
    kx, kp = jax.random.split(key)
    x = jax.random.normal(kx, (B, C, L), jnp.float32)

    raw = init_raw_params(kp, C, K)
    fused = fold_bn(raw)
    ref = ref_forward(x, raw)

    # 1) f32 MXU path, auto tile (single 256-lane tile): strict check of the
    #    fused math (folded BN, roll taps, fused shuffle store).
    out_f32 = jax.block_until_ready(
        unitb_forward(x, fused, mxu_dtype=jnp.float32))
    assert out_f32.shape == (B, C, L)
    assert jnp.allclose(out_f32, ref, atol=1e-3, rtol=1e-3), "f32 mismatch"

    # 2) f32 path with 128-lane tiles: exercises the cross-tile halo
    #    corrections and the wrapper-side halo conv.
    out_f32t = jax.block_until_ready(
        unitb_forward(x, fused, tile_l=128, mxu_dtype=jnp.float32))
    assert jnp.allclose(out_f32t, ref, atol=1e-3, rtol=1e-3), "f32 tiled mismatch"

    # 3) bf16 MXU path (pre-cast x2 half) with 128-lane tiles.
    out_bf16 = jax.block_until_ready(
        unitb_forward(x, fused, tile_l=128, mxu_dtype=jnp.bfloat16))
    assert out_bf16.shape == (B, C, L)
    assert jnp.allclose(out_bf16, ref, atol=1.5e-1, rtol=5e-2), "bf16 mismatch"

    print("KERNEL_OK")
</pallas_src>

<mosaic_0001>
module attributes {stable_mosaic.version = 11 : i64} {
  func.func @probe(%arg0: memref<8x128xf32, #tpu.memory_space<vmem>>, %arg1: memref<8x128xf32, #tpu.memory_space<vmem>>) attributes {dimension_semantics = [], scalar_prefetch = 0 : i64, scratch_operands = 0 : i64, tpu.core_type = #tpu.core_type<tc>} {
    %c0 = arith.constant 0 : index
    %c0_0 = arith.constant 0 : index
    %0 = vector.load %arg0[%c0, %c0_0] : memref<8x128xf32, #tpu.memory_space<vmem>>, vector<8x128xf32>
    %c1_i32 = arith.constant 1 : i32
    %1 = tpu.dynamic_rotate %0 by %c1_i32 dim 1 : vector<8x128xf32>, i32 -> vector<8x128xf32>
    %c0_1 = arith.constant 0 : index
    %c0_2 = arith.constant 0 : index
    %2 = vector.load %arg1[%c0_1, %c0_2] : memref<8x128xf32, #tpu.memory_space<vmem>>, vector<8x128xf32>
    tpu.vector_store %arg1[%c0_1, %c0_2], %1 {strides = array<i32>} : memref<8x128xf32, #tpu.memory_space<vmem>>, vector<8x128xf32>,
    return
  }
}

</mosaic_0001>

<llo_original>
// kernel: tpu_custom_call.1
$region0: #{tpu_custom_call.1}
  #allocation0 [shape = 'u32[]', space=smem, size = 0x4, offset = 0x4, fixed_abs, tag = 'smem constant byte address 0x4 - core index']
  #allocation1 [shape = 'u32[144,128]{1,0:T(1,128)}', space=vmem, size = 0x12000, scoped, tag = 'internal scratch']
  %s0 = inlined_call_operand.hbm [shape: f32[8,128], index: 0, kind: input, shape index: {}]
  %s1 = inlined_call_operand.hbm [shape: f32[8,128], index: 1, kind: output, shape index: {}]
  %s2 = sld [smem:[#allocation0]]
  $region18: #{tpu_custom_call.1} parent=0
    _
  %s4 = ssub.s32 1, %s2
  %s5 = scalar_select 0, %s4, %s2
  $region1: #{tpu_custom_call.1} parent=0
    #allocation2 [shape = 'u8[4096]{0}', space=vmem, size = 0x1000, scoped, tag = 'input window, operand 0, single buffered']
    #allocation3 [shape = 's32[1]{0}', space=sflag, size = 0x4, scoped, tag = 'scoped memory for tpu_custom_call.1']
    #allocation4 [shape = 's32[1]{0}', space=sflag, size = 0x4, scoped, tag = 'scoped memory for tpu_custom_call.1']
    #allocation5 [shape = 'u8[4096]{0}', space=vmem, size = 0x1000, scoped, tag = 'output window, operand 0, single buffered']
    %6 = vsyncpa [#allocation3], 0
    %7 = vsyncpa [#allocation4], 0
    // Predicated region
    $region2: #{tpu_custom_call.1} parent=1 // pred_check
      _
    $region3: #{tpu_custom_call.1} parent=1 // pred_check_branch
      %9 = sbr.rel (0) target = $region5
    $region4: #{tpu_custom_call.1} parent=1 // pred_region
      %s11 = ssub.s32 128, 128
      %12 = vsyncadd [#allocation3], %s11
      %s14 = sshll.u32 [#allocation2], 4
      %s15 = int_to_ptr.vmem [resolvable:$true] %s14
      %17 = dma.hbm_to_vmem [thread:$0]  %s0, 128, %s15, [#allocation3]
    $region5: #{tpu_custom_call.1} parent=1 // pred_fallthru
      _
    // Predicated region
    $region6: #{tpu_custom_call.1} parent=1 // pred_check
      _
    $region7: #{tpu_custom_call.1} parent=1 // pred_check_branch
      %19 = sbr.rel (0) target = $region9
    $region8: #{tpu_custom_call.1} parent=1 // pred_region
      %20 = dma.done [#allocation3], 128
    $region9: #{tpu_custom_call.1} parent=1 // pred_fallthru
      _
    %v21 = vld [vmem:[#allocation2] sm:$0xff]
    %22 = vrot.lane.b32.xlu0 %v21, 1
    %v23 = vpop.permute.xlu0 %22
    %24 = vst [vmem:[#allocation5] sm:$0xff] %v23
    // Predicated region
    $region10: #{tpu_custom_call.1} parent=1 // pred_check
      _
    $region11: #{tpu_custom_call.1} parent=1 // pred_check_branch
      %26 = sbr.rel (0) target = $region13
    $region12: #{tpu_custom_call.1} parent=1 // pred_region
      %s28 = ssub.s32 128, 128
      %29 = vsyncadd [#allocation4], %s28
      %s31 = sshll.u32 [#allocation5], 4
      %s32 = int_to_ptr.vmem [resolvable:$true] %s31
      %34 = dma.vmem_to_hbm [thread:$0]  %s32, 128, %s1, [#allocation4]
    $region13: #{tpu_custom_call.1} parent=1 // pred_fallthru
      _
    // Predicated region
    $region14: #{tpu_custom_call.1} parent=1 // pred_check
      _
    $region15: #{tpu_custom_call.1} parent=1 // pred_check_branch
      %36 = sbr.rel (0) target = $region17
    $region16: #{tpu_custom_call.1} parent=1 // pred_region
      %37 = dma.done [#allocation4], 128
    $region17: #{tpu_custom_call.1} parent=1 // pred_fallthru
      _
    %38 = vsyncpa [#allocation3], 1
    %39 = vsyncpa [#allocation4], 1

</llo_original>
